<compile_context>
chip_gen: v7x
topology: tpu7x:2x2x1
jax: 0.10.0
libtpu: 0.0.40
codegen_flags: <defaults>
</compile_context>

<pallas_src>
import math

import jax
import jax.numpy as jnp
from jax.experimental import pallas as pl
from jax.experimental.pallas import tpu as pltpu


def _state_head_kernel(x_ref, w_ref, b_ref, o_ref):
    # x_ref: (C_in, TN)    bf16  activation tile (channels x flattened bs*HW)
    # w_ref: (C_out, C_in) bf16  BN-scale-folded 1x1 conv weight (resident)
    # b_ref: (C_out, 1)    f32   folded BN bias (resident)
    # o_ref: (C_out, TN)   f32
    y = jnp.dot(w_ref[...], x_ref[...], preferred_element_type=jnp.float32)
    y = y + b_ref[...]                     # lane-broadcast over TN
    o_ref[...] = jnp.maximum(y, 0.0)


def _pick_n_tile(n):
    # Lane-dense N tile: multiple of 256 (also a multiple of 128 for v5e),
    # shrunk so the grid has >= 2 steps (pipelining + v7x megacore) when the
    # problem is big enough.  Small problems use the full extent in one block.
    if n <= 256:
        return n
    t = 2048
    while t > 256 and n <= t:
        t //= 2
    return t


def state_head_pallas(x_nchw, conv_w, bn_gamma, bn_beta, bn_mean, bn_var,
                      output_shape=(9,), eps=1e-5, n_tile=None):
    """x_nchw: (bs, C_in, H, W) f32.  conv_w: (C_out, C_in) (1x1 kernel)."""
    bs, c_in, H, W = x_nchw.shape
    c_out = conv_w.shape[0]
    hw = H * W
    assert hw == math.prod(output_shape), "spatial size must match output_shape"

    # --- Fold inference BatchNorm into the weight + a per-channel bias -------
    scale = bn_gamma * jax.lax.rsqrt(bn_var + eps)                    # (C_out,)
    bias = (bn_beta - bn_mean * scale).astype(jnp.float32)[:, None]   # (C_out,1)
    w_fold = (conv_w * scale[:, None]).astype(jnp.bfloat16)           # (C_out,C_in)

    # --- Activation: (bs,C_in,HW) -> (C_in, bs*HW) -----------------------------
    # One transpose of the leading two axes (the b*HW reshape is free); bf16
    # cast fuses into the same relayout pass.  NOTE: bf16 operands / f32 accum.
    n = bs * hw
    x_t = jnp.transpose(x_nchw.reshape(bs, c_in, hw), (1, 0, 2))
    x_t = x_t.reshape(c_in, n).astype(jnp.bfloat16)

    tn = n_tile if n_tile is not None else _pick_n_tile(n)
    grid = (pl.cdiv(n, tn),)

    cost = pl.CostEstimate(
        flops=2 * n * c_in * c_out,
        transcendentals=0,
        bytes_accessed=(x_t.size * 2 + w_fold.size * 2 + bias.size * 4
                        + n * c_out * 4))

    out = pl.pallas_call(
        _state_head_kernel,
        out_shape=jax.ShapeDtypeStruct((c_out, n), jnp.float32),
        grid=grid,
        in_specs=[
            pl.BlockSpec((c_in, tn), lambda i: (0, i)),      # activations
            pl.BlockSpec((c_out, c_in), lambda i: (0, 0)),   # weight (resident)
            pl.BlockSpec((c_out, 1), lambda i: (0, 0)),      # bias   (resident)
        ],
        out_specs=pl.BlockSpec((c_out, tn), lambda i: (0, i)),
        compiler_params=pltpu.CompilerParams(
            dimension_semantics=("parallel",)),
        cost_estimate=cost,
    )(x_t, w_fold, bias)

    # (C_out, bs*HW) -> (bs, C_out, HW); the result array is tiny (C_out=32).
    out = jnp.transpose(out.reshape(c_out, bs, hw), (1, 0, 2))
    return out.reshape((bs, c_out) + tuple(output_shape))


def _reference(x_nchw, conv_w, bn_gamma, bn_beta, bn_mean, bn_var,
               output_shape=(9,), eps=1e-5):
    # Pure-JAX f32 reference of the PyTorch forward (BN in eval mode).
    bs = x_nchw.shape[0]
    y = jnp.einsum("bchw,oc->bohw", x_nchw, conv_w)
    inv = bn_gamma / jnp.sqrt(bn_var + eps)
    y = (y - bn_mean[None, :, None, None]) * inv[None, :, None, None] \
        + bn_beta[None, :, None, None]
    y = jnp.maximum(y, 0.0)
    return y.reshape((bs, conv_w.shape[0]) + tuple(output_shape))


if __name__ == "__main__":
    # Small config: filter_size=128 input channels, output_channel=32,
    # spatial 3x3 so that H*W == prod(output_shape) == 9, batch=4.
    bs, filter_size, H, W = 4, 128, 3, 3
    output_channel = 32
    output_shape = (9,)

    key = jax.random.PRNGKey(0)
    kx, kw, kg, kb, km, kv = jax.random.split(key, 6)

    x = jax.random.normal(kx, (bs, filter_size, H, W), dtype=jnp.float32)
    conv_w = jax.random.normal(kw, (output_channel, filter_size),
                               dtype=jnp.float32) * 0.05
    bn_gamma = 1.0 + 0.1 * jax.random.normal(kg, (output_channel,), jnp.float32)
    bn_beta = 0.1 * jax.random.normal(kb, (output_channel,), jnp.float32)
    bn_mean = 0.1 * jax.random.normal(km, (output_channel,), jnp.float32)
    bn_var = jnp.abs(1.0 + 0.1 * jax.random.normal(kv, (output_channel,),
                                                   jnp.float32))

    out = state_head_pallas(x, conv_w, bn_gamma, bn_beta, bn_mean, bn_var,
                            output_shape=output_shape)
    out = jax.block_until_ready(out)

    ref = _reference(x, conv_w, bn_gamma, bn_beta, bn_mean, bn_var,
                     output_shape=output_shape)
    assert out.shape == (bs, output_channel) + output_shape, out.shape
    # bf16 matmul operands with f32 accumulation -> loosened tolerance.
    assert jnp.allclose(out, ref, atol=5e-2, rtol=5e-2), \
        float(jnp.max(jnp.abs(out - ref)))

    print("KERNEL_OK")
</pallas_src>

<mosaic_0001>
module attributes {stable_mosaic.version = 11 : i64} {
  func.func @_state_head_kernel(%arg0: i32, %arg1: memref<128x36xbf16, #tpu.memory_space<vmem>>, %arg2: memref<32x128xbf16, #tpu.memory_space<vmem>>, %arg3: memref<32x1xf32, #tpu.memory_space<vmem>>, %arg4: memref<32x36xf32, #tpu.memory_space<vmem>>) attributes {dimension_semantics = [#tpu.dimension_semantics<parallel>], iteration_bounds = array<i64: 1>, scalar_prefetch = 0 : i64, scratch_operands = 0 : i64, tpu.core_type = #tpu.core_type<tc>, window_params = [{transform_indices = @transform_0, window_bounds = array<i64: 128, 36>}, {pipeline_mode = #tpu.pipeline_mode<synchronous>, transform_indices = @transform_1, window_bounds = array<i64: 32, 128>}, {pipeline_mode = #tpu.pipeline_mode<synchronous>, transform_indices = @transform_2, window_bounds = array<i64: 32, 1>}, {transform_indices = @transform_3, window_bounds = array<i64: 32, 36>}]} {
    %c0 = arith.constant 0 : index
    %c0_0 = arith.constant 0 : index
    %0 = vector.load %arg2[%c0, %c0_0] : memref<32x128xbf16, #tpu.memory_space<vmem>>, vector<32x128xbf16>
    %c0_1 = arith.constant 0 : index
    %c0_2 = arith.constant 0 : index
    %1 = vector.load %arg1[%c0_1, %c0_2] : memref<128x36xbf16, #tpu.memory_space<vmem>>, vector<128x36xbf16>
    %cst = arith.constant dense<0.000000e+00> : vector<32x36xf32>
    %2 = tpu.matmul %0, %1, %cst {dimension_numbers = #tpu.dot_dimension_numbers<[1], [0], [0], [1], [0, 0, 1, 1], [], []>} : vector<32x128xbf16>, vector<128x36xbf16>, vector<32x36xf32> -> vector<32x36xf32>
    %c0_3 = arith.constant 0 : index
    %c0_4 = arith.constant 0 : index
    %3 = vector.load %arg3[%c0_3, %c0_4] : memref<32x1xf32, #tpu.memory_space<vmem>>, vector<32x1xf32>
    %4 = vector.broadcast %3 : vector<32x1xf32> to vector<32x36xf32>
    %5 = arith.addf %2, %4 : vector<32x36xf32>
    %cst_5 = arith.constant 0.000000e+00 : f32
    %6 = vector.broadcast %cst_5 : f32 to vector<32x36xf32>
    %7 = arith.maximumf %5, %6 : vector<32x36xf32>
    %c0_6 = arith.constant 0 : index
    %c0_7 = arith.constant 0 : index
    %8 = vector.load %arg4[%c0_6, %c0_7] : memref<32x36xf32, #tpu.memory_space<vmem>>, vector<32x36xf32>
    tpu.vector_store %arg4[%c0_6, %c0_7], %7 {strides = array<i32>} : memref<32x36xf32, #tpu.memory_space<vmem>>, vector<32x36xf32>,
    return
  }
  func.func @transform_0(%arg0: i32) -> (i32, i32) {
    %c0_i32 = arith.constant 0 : i32
    %c0_i32_0 = arith.constant 0 : i32
    return %c0_i32, %arg0 : i32, i32
  }
  func.func @transform_1(%arg0: i32) -> (i32, i32) {
    %c0_i32 = arith.constant 0 : i32
    %c0_i32_0 = arith.constant 0 : i32
    %c0_i32_1 = arith.constant 0 : i32
    return %c0_i32, %c0_i32_0 : i32, i32
  }
  func.func @transform_2(%arg0: i32) -> (i32, i32) {
    %c0_i32 = arith.constant 0 : i32
    %c0_i32_0 = arith.constant 0 : i32
    %c0_i32_1 = arith.constant 0 : i32
    return %c0_i32, %c0_i32_0 : i32, i32
  }
  func.func @transform_3(%arg0: i32) -> (i32, i32) {
    %c0_i32 = arith.constant 0 : i32
    %c0_i32_0 = arith.constant 0 : i32
    return %c0_i32, %arg0 : i32, i32
  }
}

</mosaic_0001>

<llo_original>
// kernel: tpu_custom_call.1
$region0: #{tpu_custom_call.1}
  #allocation0 [shape = 'u32[]', space=smem, size = 0x4, offset = 0x4, fixed_abs, tag = 'smem constant byte address 0x4 - core index']
  #allocation1 [shape = 'u32[144,128]{1,0:T(1,128)}', space=vmem, size = 0x12000, scoped, tag = 'internal scratch']
  %s0 = inlined_call_operand.vmem [shape: bf16[128,36], index: 0, kind: input, shape index: {}]
  %s1 = inlined_call_operand.vmem [shape: bf16[32,128], index: 1, kind: input, shape index: {}]
  %s2 = inlined_call_operand.vmem [shape: f32[32,1], index: 2, kind: input, shape index: {}]
  %s3 = inlined_call_operand.hbm [shape: f32[32,36], index: 3, kind: output, shape index: {}]
  %s4 = sld [smem:[#allocation0]]
  $region22: #{tpu_custom_call.1} parent=0
    _
  %s6 = ssub.s32 1, %s4
  %s7 = scalar_select 0, %s6, %s4
  $region1: #{tpu_custom_call.1} parent=0
    #allocation2 [shape = 'u8[16384]{0}', space=vmem, size = 0x4000, scoped, tag = 'output window, operand 0, single buffered']
    #allocation3 [shape = 's32[1]{0}', space=sflag, size = 0x4, scoped, tag = 'scoped memory for tpu_custom_call.1']
    %8 = vsyncpa [#allocation3], 0
    // Predicated region
    $region2: #{tpu_custom_call.1} parent=1 // pred_check
      _
    $region3: #{tpu_custom_call.1} parent=1 // pred_check_branch
      %10 = sbr.rel (0) target = $region5
    $region4: #{tpu_custom_call.1} parent=1 // pred_region
      _
    $region5: #{tpu_custom_call.1} parent=1 // pred_fallthru
      _
    // Predicated region
    $region6: #{tpu_custom_call.1} parent=1 // pred_check
      _
    $region7: #{tpu_custom_call.1} parent=1 // pred_check_branch
      %12 = sbr.rel (0) target = $region9
    $region8: #{tpu_custom_call.1} parent=1 // pred_region
      _
    $region9: #{tpu_custom_call.1} parent=1 // pred_fallthru
      _
    // Predicated region
    $region10: #{tpu_custom_call.1} parent=1 // pred_check
      _
    $region11: #{tpu_custom_call.1} parent=1 // pred_check_branch
      %14 = sbr.rel (0) target = $region13
    $region12: #{tpu_custom_call.1} parent=1 // pred_region
      _
    $region13: #{tpu_custom_call.1} parent=1 // pred_fallthru
      _
    %v16 = vld [vmem:[%s1] sm:$0xf]
    %v17 = vld [vmem:[%s1 + $0x4] sm:$0xf]
    %v18 = vld [vmem:[%s1 + $0x8] sm:$0xf]
    %v19 = vld [vmem:[%s1 + $0xc] sm:$0xf]
    %v20 = vld [vmem:[%s0] sm:$0xf]
    %v21 = vld [vmem:[%s0 + $0x4] sm:$0xf]
    %v22 = vld [vmem:[%s0 + $0x8] sm:$0xf]
    %v23 = vld [vmem:[%s0 + $0xc] sm:$0xf]
    %v24 = vld [vmem:[%s0 + $0x10] sm:$0xf]
    %v25 = vld [vmem:[%s0 + $0x14] sm:$0xf]
    %v26 = vld [vmem:[%s0 + $0x18] sm:$0xf]
    %v27 = vld [vmem:[%s0 + $0x1c] sm:$0xf]
    %v28 = vld [vmem:[%s0 + $0x20] sm:$0xf]
    %v29 = vld [vmem:[%s0 + $0x24] sm:$0xf]
    %v30 = vld [vmem:[%s0 + $0x28] sm:$0xf]
    %v31 = vld [vmem:[%s0 + $0x2c] sm:$0xf]
    %v32 = vld [vmem:[%s0 + $0x30] sm:$0xf]
    %v33 = vld [vmem:[%s0 + $0x34] sm:$0xf]
    %v34 = vld [vmem:[%s0 + $0x38] sm:$0xf]
    %v35 = vld [vmem:[%s0 + $0x3c] sm:$0xf]
    %v36 = vld [vmem:[%s2] sm:$0xff]
    %v37 = vld [vmem:[%s2 + $0x8] sm:$0xff]
    %v38 = vld [vmem:[%s2 + $0x10] sm:$0xff]
    %v39 = vld [vmem:[%s2 + $0x18] sm:$0xff]
    %41 = vset.pattern.permute.xlu0 0
    %42 = vperm.xlu0 %41, %v36
    %v43 = vpop.permute.xlu0 %42
    %46 = vset.pattern.permute.xlu0 0
    %47 = vperm.xlu0 %46, %v37
    %v48 = vpop.permute.xlu0 %47
    %51 = vset.pattern.permute.xlu0 0
    %52 = vperm.xlu0 %51, %v38
    %v53 = vpop.permute.xlu0 %52
    %56 = vset.pattern.permute.xlu0 0
    %57 = vperm.xlu0 %56, %v39
    %v58 = vpop.permute.xlu0 %57
    %v64 = vunpack.c.l.b16 %v16
    %v65 = vunpack.c.l.b16 %v17
    %v66 = vunpack.c.l.b16 %v18
    %v67 = vunpack.c.l.b16 %v19
    %v68 = vpack.c.b16 %v65, %v64
    %v69 = vpack.c.b16 %v67, %v66
    %v88 = vunpack.c.l.b16 %v20
    %v89 = vunpack.c.l.b16 %v21
    %v90 = vunpack.c.l.b16 %v22
    %v91 = vunpack.c.l.b16 %v23
    %v92 = vunpack.c.l.b16 %v24
    %v93 = vunpack.c.l.b16 %v25
    %v94 = vunpack.c.l.b16 %v26
    %v95 = vunpack.c.l.b16 %v27
    %v96 = vunpack.c.l.b16 %v28
    %v97 = vunpack.c.l.b16 %v29
    %v98 = vunpack.c.l.b16 %v30
    %v99 = vunpack.c.l.b16 %v31
    %v100 = vunpack.c.l.b16 %v32
    %v101 = vunpack.c.l.b16 %v33
    %v102 = vunpack.c.l.b16 %v34
    %v103 = vunpack.c.l.b16 %v35
    %v104 = vpack.c.b16 %v89, %v88
    %v105 = vpack.c.b16 %v91, %v90
    %v106 = vpack.c.b16 %v93, %v92
    %v107 = vpack.c.b16 %v95, %v94
    %v108 = vpack.c.b16 %v97, %v96
    %v109 = vpack.c.b16 %v99, %v98
    %v110 = vpack.c.b16 %v101, %v100
    %v111 = vpack.c.b16 %v103, %v102
    %120 = vmatprep.subr.bf16.mxu0 0
    %121 = vmatpush1.bf16.msra.mxu0 %v104
    %122 = vmatprep.subr.bf16.mxu0 0
    %123 = vmatpush1.bf16.msra.mxu0 %v105
    %124 = vmatprep.subr.bf16.mxu0 0
    %125 = vmatpush1.bf16.msra.mxu0 %v106
    %126 = vmatprep.subr.bf16.mxu0 0
    %127 = vmatpush1.bf16.msra.mxu0 %v107
    %128 = vmatprep.subr.bf16.mxu0 0
    %129 = vmatpush1.bf16.msra.mxu0 %v108
    %130 = vmatprep.subr.bf16.mxu0 0
    %131 = vmatpush1.bf16.msra.mxu0 %v109
    %132 = vmatprep.subr.bf16.mxu0 0
    %133 = vmatpush1.bf16.msra.mxu0 %v110
    %134 = vmatprep.subr.bf16.mxu0 0
    %135 = vmatpush1.bf16.msra.mxu0 %v111
    %136 = vmatprep.subr.bf16.mxu0 0
    %137 = vmatpush1.bf16.msra.mxu0 0
    %138 = vmatprep.subr.bf16.mxu0 0
    %139 = vmatpush1.bf16.msra.mxu0 0
    %140 = vmatprep.subr.bf16.mxu0 0
    %141 = vmatpush1.bf16.msra.mxu0 0
    %142 = vmatprep.subr.bf16.mxu0 0
    %143 = vmatpush1.bf16.msra.mxu0 0
    %144 = vmatprep.subr.bf16.mxu0 0
    %145 = vmatpush1.bf16.msra.mxu0 0
    %146 = vmatprep.subr.bf16.mxu0 0
    %147 = vmatpush1.bf16.msra.mxu0 0
    %148 = vmatprep.subr.bf16.mxu0 0
    %149 = vmatpush1.bf16.msra.mxu0 0
    %150 = vmatprep.subr.bf16.mxu0 0
    %151 = vmatpush1.bf16.msra.mxu0 0
    %152 = vmatprep.mubr.bf16.mxu0 0
    %153 = vmatmul.mubr.bf16.gmra.mrb[0].mxu0 %v68
    %v154 = vpop.f32.mrb[0].mxu0
    %v155 = vadd.f32 %v43, %v154
    %v156 = vpop.f32.mrb[0].mxu0
    %v157 = vpop.f32.mrb[0].mxu0
    %v158 = vadd.f32 %v48, %v157
    %v159 = vpop.f32.mrb[0].mxu0
    %160 = vmatprep.mubr.bf16.mxu0 0
    %161 = vmatmul.mubr.bf16.gmra.mrb[0].mxu0 %v69
    %v162 = vpop.f32.mrb[0].mxu0
    %v163 = vadd.f32 %v53, %v162
    %v164 = vpop.f32.mrb[0].mxu0
    %v165 = vpop.f32.mrb[0].mxu0
    %v166 = vadd.f32 %v58, %v165
    %v167 = vpop.f32.mrb[0].mxu0
    %168 = vdwg.mxu0
    %v169 = vmax.f32 %v155, 0.0
    %v170 = vmax.f32 %v158, 0.0
    %v171 = vmax.f32 %v163, 0.0
    %v172 = vmax.f32 %v166, 0.0
    %vm173 = vcmask 293888
    %174 = vst.msk [vmem:[#allocation2] sm:$0xff] %vm173, %v169
    %175 = vst.msk [vmem:[#allocation2 + $0x8] sm:$0xff] %vm173, %v170
    %176 = vst.msk [vmem:[#allocation2 + $0x10] sm:$0xff] %vm173, %v171
    %177 = vst.msk [vmem:[#allocation2 + $0x18] sm:$0xff] %vm173, %v172
    // Predicated region
    $region14: #{tpu_custom_call.1} parent=1 // pred_check
      _
    $region15: #{tpu_custom_call.1} parent=1 // pred_check_branch
      %179 = sbr.rel (0) target = $region17
    $region16: #{tpu_custom_call.1} parent=1 // pred_region
      %s181 = ssub.s32 512, 512
      %182 = vsyncadd [#allocation3], %s181
      %s183 = sshll.u32 [#allocation2], 4
      %s184 = int_to_ptr.vmem [resolvable:$true] %s183
      %189 = dma.vmem_to_hbm [thread:$0]  %s184, 512, %s3, [#allocation3], 128, 128, 8
    $region17: #{tpu_custom_call.1} parent=1 // pred_fallthru
      _
    // Predicated region
    $region18: #{tpu_custom_call.1} parent=1 // pred_check
      _
    $region19: #{tpu_custom_call.1} parent=1 // pred_check_branch
      %191 = sbr.rel (0) target = $region21
    $region20: #{tpu_custom_call.1} parent=1 // pred_region
      %192 = dma.done [#allocation3], 512
    $region21: #{tpu_custom_call.1} parent=1 // pred_fallthru
      _
    %193 = vsyncpa [#allocation3], 1

</llo_original>
